<compile_context>
chip_gen: v5e
topology: v5e:2x2
jax: 0.10.0
libtpu: 0.0.40
codegen_flags: <defaults>
</compile_context>

<pallas_src>
import math
import functools

import jax
import jax.numpy as jnp
from jax import lax
from jax.experimental import pallas as pl
from jax.experimental.pallas import tpu as pltpu


def attention_kernel(x_ref, wqkv_ref, wout_ref, o_ref, acc_ref, *kv_cache,
                     scale, dim_head, group, tq, cache_kv):
    # x_ref    : (1, N, dim_pad)            full sequence (q rows sliced from it)
    # wqkv_ref : (3, 1, dim_pad, G*d)       this head-group's [Wq, Wk, Wv]
    # wout_ref : (1, G*d, dim_pad)          this head-group's rows of W_out
    # o_ref    : (1, tq, dim_pad)           output tile (revisited across head groups)
    # acc_ref  : (tq, dim_pad) f32          fused output-projection accumulator
    # kv_cache : ()  or  (k_cache, v_cache) each (n_groups, N, G*d)  (only if n_qt > 1)
    grp = pl.program_id(2)
    qt = pl.program_id(1)
    in_dt = x_ref.dtype                       # keep MXU operands narrow (bf16 fast path)

    @pl.when(grp == 0)
    def _():
        acc_ref[...] = jnp.zeros_like(acc_ref)

    if cache_kv:
        k_cache_ref, v_cache_ref = kv_cache

        # Compute this group's K/V projections once per (batch, group) at qt == 0 and
        # reuse them for the remaining q-tiles (no redundant MXU work / weight restream).
        @pl.when(qt == 0)
        def _():
            x_full = x_ref[0]                                          # (N, dim_pad)
            k_cache_ref[grp] = jnp.dot(
                x_full, wqkv_ref[1, 0],
                preferred_element_type=jnp.float32).astype(in_dt)
            v_cache_ref[grp] = jnp.dot(
                x_full, wqkv_ref[2, 0],
                preferred_element_type=jnp.float32).astype(in_dt)

        k = k_cache_ref[grp]                                           # (N, G*d)
        v = v_cache_ref[grp]
        q_start = pl.multiple_of(qt * tq, tq)
        xq = x_ref[0, pl.ds(q_start, tq), :]                           # (tq, dim_pad)
    else:
        # n_qt == 1: q rows are the whole sequence; compute K/V inline.
        x_full = x_ref[0]                                              # (N, dim_pad)
        xq = x_full
        k = jnp.dot(x_full, wqkv_ref[1, 0],
                    preferred_element_type=jnp.float32).astype(in_dt)  # (N, G*d)
        v = jnp.dot(x_full, wqkv_ref[2, 0],
                    preferred_element_type=jnp.float32).astype(in_dt)

    # Grouped Q projection: one lane-dense (tq, dim) x (dim, G*d) matmul.
    # Scale folded into q (small VALU op) rather than the (tq, N) scores.
    q = (jnp.dot(xq, wqkv_ref[0, 0], preferred_element_type=jnp.float32)
         * scale).astype(in_dt)                                        # (tq, G*d)

    # Per-head attention within the group (small unrolled loop; static lane slices).
    outs = []
    for hi in range(group):
        lo, hi_end = hi * dim_head, (hi + 1) * dim_head
        qh = q[:, lo:hi_end]                                           # (tq, d)
        kh = k[:, lo:hi_end]                                           # (N, d)
        vh = v[:, lo:hi_end]                                           # (N, d)

        # q @ k^T without materializing a transpose (contract last dims).
        s = lax.dot_general(qh, kh,
                            dimension_numbers=(((1,), (1,)), ((), ())),
                            preferred_element_type=jnp.float32)        # (tq, N) f32

        m = jnp.max(s, axis=-1, keepdims=True)
        e = jnp.exp(s - m)
        l = jnp.sum(e, axis=-1, keepdims=True)

        # Deferred normalization: multiply the (tq, d) result instead of (tq, N) attn.
        oh = jnp.dot(e.astype(in_dt), vh, preferred_element_type=jnp.float32)
        oh = oh * pl.reciprocal(l, approx=True)                        # (tq, d) f32
        outs.append(oh.astype(in_dt))

    out_g = outs[0] if group == 1 else jnp.concatenate(outs, axis=-1)  # (tq, G*d)

    # Fused grouped output projection, accumulated over head groups in f32.
    acc_ref[...] += jnp.dot(out_g, wout_ref[0],
                            preferred_element_type=jnp.float32)        # (tq, dim_pad)

    @pl.when(grp == pl.num_programs(2) - 1)
    def _():
        o_ref[0] = acc_ref[...].astype(o_ref.dtype)


def _pick_head_group(heads, dim_head, target_lanes=256):
    # Largest divisor of `heads` whose grouped width fits the target lane budget.
    # (256 lanes fills the v6e/v7x MXU output; on v5e 2 heads / 128 lanes already
    #  fill the MXU -- pass group_heads=2 there if desired.)
    best = 1
    for g in range(1, heads + 1):
        if heads % g == 0 and g * dim_head <= max(target_lanes, dim_head):
            best = g
    return best


def _vmem_clamp_bytes():
    cap = None
    try:
        cap = getattr(pltpu.get_tpu_info(), "vmem_capacity_bytes", None)
    except Exception:
        cap = None
    if not cap:
        cap = 64 * 1024 * 1024          # conservative (v7x per-core VMEM)
    return max(32 * 1024 * 1024, int(cap) * 3 // 4)   # 96 MiB on 128 MiB parts, 48 MiB on v7x


def attention_forward(x, w_qkv, w_out, *, heads, dim_head, q_block=512, group_heads=None):
    """x: (B, N, dim); w_qkv: (dim, 3*heads*dim_head); w_out: (heads*dim_head, dim).

    Weights are stored as (in_features, out_features), i.e. y = x @ W
    (equivalent to PyTorch's y = x @ W_pt.T).
    """
    B, N, dim = x.shape
    inner = heads * dim_head
    assert w_qkv.shape == (dim, 3 * inner)
    assert w_out.shape == (inner, dim)
    scale = dim_head ** (-0.5)

    group = group_heads if group_heads is not None else _pick_head_group(heads, dim_head)
    assert heads % group == 0
    n_groups = heads // group
    gdd = group * dim_head

    # Lane-dense output: pad the model dim to a multiple of 128 (zero rows/cols, sliced off).
    dim_pad = ((dim + 127) // 128) * 128
    if dim_pad != dim:
        x_p = jnp.pad(x, ((0, 0), (0, 0), (0, dim_pad - dim)))
        w_qkv_p = jnp.pad(w_qkv, ((0, dim_pad - dim), (0, 0)))
        w_out_p = jnp.pad(w_out, ((0, 0), (0, dim_pad - dim)))
    else:
        x_p, w_qkv_p, w_out_p = x, w_qkv, w_out

    # Layout plumbing: nn.Linear(dim, 3*inner) columns are [q | k | v], head-major, so
    # group the heads G at a time along the lane axis of each weight block.
    w_qkv_r = (w_qkv_p.reshape(dim_pad, 3, n_groups, group, dim_head)
               .transpose(1, 2, 0, 3, 4)
               .reshape(3, n_groups, dim_pad, gdd))                    # (3, H/G, dim_pad, G*d)
    w_out_r = w_out_p.reshape(n_groups, gdd, dim_pad)                  # (H/G, G*d, dim_pad)

    # Query-axis tiling; n_qt == 1 is the common case (no K/V recompute at all).
    tq = N if N <= q_block else q_block
    assert N % tq == 0, "sequence length must be divisible by the q tile"
    n_qt = N // tq
    cache_kv = n_qt > 1

    # VMEM budget: all coexisting blocks + f32/native temporaries, clamped per generation.
    isz = jnp.dtype(x.dtype).itemsize
    interm_bytes = (4 * (3 * tq * N + (tq + 2 * N) * gdd + tq * dim_pad)   # f32 dots/e/oh + q/k/v
                    + isz * (tq * N + (tq + 2 * N) * gdd))                 # native-dtype casts
    block_bytes = (
        2 * N * dim_pad * isz                       # x block (double-buffered)
        + 2 * 3 * dim_pad * gdd * isz               # grouped qkv weights
        + 2 * gdd * dim_pad * isz                   # grouped out-proj weights
        + 2 * tq * dim_pad * isz                    # output block
        + tq * dim_pad * 4                          # f32 accumulator scratch
        + (2 * n_groups * N * gdd * isz if cache_kv else 0)   # persistent K/V cache
        + interm_bytes
    )
    vmem_limit = int(min(max(block_bytes * 5 // 4, 32 * 1024 * 1024), _vmem_clamp_bytes()))

    scratch_shapes = [pltpu.VMEM((tq, dim_pad), jnp.float32)]
    if cache_kv:
        scratch_shapes += [pltpu.VMEM((n_groups, N, gdd), x.dtype),
                           pltpu.VMEM((n_groups, N, gdd), x.dtype)]

    kernel = functools.partial(attention_kernel, scale=scale, dim_head=dim_head,
                               group=group, tq=tq, cache_kv=cache_kv)

    out = pl.pallas_call(
        kernel,
        out_shape=jax.ShapeDtypeStruct((B, N, dim_pad), x.dtype),
        grid_spec=pltpu.PrefetchScalarGridSpec(
            num_scalar_prefetch=0,
            grid=(B, n_qt, n_groups),
            in_specs=[
                pl.BlockSpec((1, N, dim_pad), lambda b, qt, g: (b, 0, 0)),          # x (full seq)
                pl.BlockSpec((3, 1, dim_pad, gdd), lambda b, qt, g: (0, g, 0, 0)),  # qkv weights
                pl.BlockSpec((1, gdd, dim_pad), lambda b, qt, g: (g, 0, 0)),        # out-proj weights
            ],
            out_specs=pl.BlockSpec((1, tq, dim_pad), lambda b, qt, g: (b, qt, 0)),
            scratch_shapes=scratch_shapes,
        ),
        compiler_params=pltpu.CompilerParams(
            # head-group axis is the reduction axis (last, "arbitrary"); the q-tile axis
            # must stay sequential when the K/V cache is live across q-tiles.
            dimension_semantics=("parallel",
                                 "arbitrary" if cache_kv else "parallel",
                                 "arbitrary"),
            vmem_limit_bytes=vmem_limit,
        ),
    )(x_p, w_qkv_r, w_out_r)

    return out if dim_pad == dim else out[..., :dim]


def attention_reference(x, w_qkv, w_out, *, heads, dim_head):
    """Pure-JAX f32 reference mirroring the PyTorch forward (selfatt, eval)."""
    B, N, dim = x.shape
    inner = heads * dim_head
    scale = dim_head ** (-0.5)
    xf = x.astype(jnp.float32)
    qkv = xf @ w_qkv.astype(jnp.float32)
    q, k, v = jnp.split(qkv, 3, axis=-1)

    def to_heads(t):  # 'b n (h d) -> b h n d'
        return t.reshape(B, N, heads, dim_head).transpose(0, 2, 1, 3)

    q, k, v = map(to_heads, (q, k, v))
    dots = jnp.einsum("bhnd,bhmd->bhnm", q, k) * scale
    attn = jax.nn.softmax(dots, axis=-1)
    out = jnp.einsum("bhnm,bhmd->bhnd", attn, v)
    out = out.transpose(0, 2, 1, 3).reshape(B, N, inner)
    return out @ w_out.astype(jnp.float32)


if __name__ == "__main__":
    # Small deterministic example consistent with Attention(dim=32, heads=8, dim_head=64).
    B, N, dim = 2, 8, 32
    heads, dim_head = 8, 64
    inner = heads * dim_head

    key = jax.random.PRNGKey(0)
    kx, kqkv, kout, kx2 = jax.random.split(key, 4)

    x_f32 = jax.random.normal(kx, (B, N, dim), dtype=jnp.float32)
    w_qkv_f32 = jax.random.normal(kqkv, (dim, 3 * inner), dtype=jnp.float32) / math.sqrt(dim)
    w_out_f32 = jax.random.normal(kout, (inner, dim), dtype=jnp.float32) / math.sqrt(inner)

    # ---- f32 path (operands stay f32; loose tolerance covers the approx reciprocal) ----
    y32 = attention_forward(x_f32, w_qkv_f32, w_out_f32, heads=heads, dim_head=dim_head)
    y32 = jax.block_until_ready(y32)
    ref32 = attention_reference(x_f32, w_qkv_f32, w_out_f32, heads=heads, dim_head=dim_head)
    assert y32.shape == (B, N, dim)
    assert jnp.allclose(y32, ref32, atol=1e-2, rtol=1e-2), "f32 mismatch vs reference"

    # ---- bf16 fast path (bf16 MXU operands, f32 accumulation) ----
    x_bf, wqkv_bf, wout_bf = (t.astype(jnp.bfloat16) for t in (x_f32, w_qkv_f32, w_out_f32))
    y_bf = attention_forward(x_bf, wqkv_bf, wout_bf, heads=heads, dim_head=dim_head)
    y_bf = jax.block_until_ready(y_bf)
    ref_bf = attention_reference(x_bf, wqkv_bf, wout_bf, heads=heads, dim_head=dim_head)
    assert y_bf.dtype == jnp.bfloat16
    assert jnp.allclose(y_bf.astype(jnp.float32), ref_bf, atol=6e-2, rtol=6e-2), \
        "bf16 mismatch vs reference"

    # ---- q-tiled path (n_qt > 1) exercising the persistent K/V cache ----
    B2, N2 = 1, 32
    x2 = jax.random.normal(kx2, (B2, N2, dim), dtype=jnp.float32)
    y2 = attention_forward(x2, w_qkv_f32, w_out_f32, heads=heads, dim_head=dim_head, q_block=16)
    y2 = jax.block_until_ready(y2)
    ref2 = attention_reference(x2, w_qkv_f32, w_out_f32, heads=heads, dim_head=dim_head)
    assert jnp.allclose(y2, ref2, atol=1e-2, rtol=1e-2), "q-tiled path mismatch vs reference"

    print("KERNEL_OK")
</pallas_src>

<mosaic_0001>
module attributes {stable_mosaic.version = 11 : i64} {
  func.func @attention_kernel(%arg0: i32, %arg1: i32, %arg2: i32, %arg3: memref<1x8x128xf32, #tpu.memory_space<vmem>>, %arg4: memref<3x1x128x256xf32, #tpu.memory_space<vmem>>, %arg5: memref<1x256x128xf32, #tpu.memory_space<vmem>>, %arg6: memref<1x8x128xf32, #tpu.memory_space<vmem>>, %arg7: memref<8x128xf32, #tpu.memory_space<vmem>>) attributes {dimension_semantics = [#tpu.dimension_semantics<parallel>, #tpu.dimension_semantics<parallel>, #tpu.dimension_semantics<arbitrary>], iteration_bounds = array<i64: 2, 1, 2>, scalar_prefetch = 0 : i64, scratch_operands = 1 : i64, tpu.core_type = #tpu.core_type<tc>, window_params = [{transform_indices = @transform_0, window_bounds = array<i64: 1, 8, 128>}, {transform_indices = @transform_1, window_bounds = array<i64: 3, 1, 128, 256>}, {transform_indices = @transform_2, window_bounds = array<i64: 1, 256, 128>}, {transform_indices = @transform_3, window_bounds = array<i64: 1, 8, 128>}]} {
    %c0_i32 = arith.constant 0 : i32
    %0 = arith.cmpi eq, %arg2, %c0_i32 : i32
    %1 = arith.extui %0 : i1 to i32
    %c0_i32_0 = arith.constant 0 : i32
    %2 = arith.cmpi ne, %1, %c0_i32_0 : i32
    scf.if %2 {
      %cst_41 = arith.constant 0.000000e+00 : f32
      %86 = vector.broadcast %cst_41 : f32 to vector<8x128xf32>
      %c0_42 = arith.constant 0 : index
      %c0_43 = arith.constant 0 : index
      %87 = vector.load %arg7[%c0_42, %c0_43] : memref<8x128xf32, #tpu.memory_space<vmem>>, vector<8x128xf32>
      tpu.vector_store %arg7[%c0_42, %c0_43], %86 {strides = array<i32>} : memref<8x128xf32, #tpu.memory_space<vmem>>, vector<8x128xf32>,
    } else {
    }
    %c0 = arith.constant 0 : index
    %c0_1 = arith.constant 0 : index
    %c0_2 = arith.constant 0 : index
    %3 = vector.load %arg3[%c0, %c0_1, %c0_2] : memref<1x8x128xf32, #tpu.memory_space<vmem>>, vector<1x8x128xf32>
    %4 = vector.shape_cast %3 : vector<1x8x128xf32> to vector<8x128xf32>
    %c1 = arith.constant 1 : index
    %c0_3 = arith.constant 0 : index
    %c0_4 = arith.constant 0 : index
    %c0_5 = arith.constant 0 : index
    %5 = vector.load %arg4[%c1, %c0_3, %c0_4, %c0_5] : memref<3x1x128x256xf32, #tpu.memory_space<vmem>>, vector<1x1x128x256xf32>
    %6 = vector.shape_cast %5 : vector<1x1x128x256xf32> to vector<128x256xf32>
    %cst = arith.constant dense<0.000000e+00> : vector<8x256xf32>
    %7 = tpu.matmul %4, %6, %cst {dimension_numbers = #tpu.dot_dimension_numbers<[1], [0], [0], [1], [0, 0, 1, 1], [], []>} : vector<8x128xf32>, vector<128x256xf32>, vector<8x256xf32> -> vector<8x256xf32>
    %c2 = arith.constant 2 : index
    %c0_6 = arith.constant 0 : index
    %c0_7 = arith.constant 0 : index
    %c0_8 = arith.constant 0 : index
    %8 = vector.load %arg4[%c2, %c0_6, %c0_7, %c0_8] : memref<3x1x128x256xf32, #tpu.memory_space<vmem>>, vector<1x1x128x256xf32>
    %9 = vector.shape_cast %8 : vector<1x1x128x256xf32> to vector<128x256xf32>
    %cst_9 = arith.constant dense<0.000000e+00> : vector<8x256xf32>
    %10 = tpu.matmul %4, %9, %cst_9 {dimension_numbers = #tpu.dot_dimension_numbers<[1], [0], [0], [1], [0, 0, 1, 1], [], []>} : vector<8x128xf32>, vector<128x256xf32>, vector<8x256xf32> -> vector<8x256xf32>
    %c0_10 = arith.constant 0 : index
    %c0_11 = arith.constant 0 : index
    %c0_12 = arith.constant 0 : index
    %c0_13 = arith.constant 0 : index
    %11 = vector.load %arg4[%c0_10, %c0_11, %c0_12, %c0_13] : memref<3x1x128x256xf32, #tpu.memory_space<vmem>>, vector<1x1x128x256xf32>
    %12 = vector.shape_cast %11 : vector<1x1x128x256xf32> to vector<128x256xf32>
    %cst_14 = arith.constant dense<0.000000e+00> : vector<8x256xf32>
    %13 = tpu.matmul %4, %12, %cst_14 {dimension_numbers = #tpu.dot_dimension_numbers<[1], [0], [0], [1], [0, 0, 1, 1], [], []>} : vector<8x128xf32>, vector<128x256xf32>, vector<8x256xf32> -> vector<8x256xf32>
    %cst_15 = arith.constant 1.250000e-01 : f32
    %14 = vector.broadcast %cst_15 : f32 to vector<8x256xf32>
    %15 = arith.mulf %13, %14 : vector<8x256xf32>
    %16 = vector.extract_strided_slice %15 {offsets = [0, 0], sizes = [8, 64], strides = [1, 1]} : vector<8x256xf32> to vector<8x64xf32>
    %17 = vector.extract_strided_slice %7 {offsets = [0, 0], sizes = [8, 64], strides = [1, 1]} : vector<8x256xf32> to vector<8x64xf32>
    %18 = vector.extract_strided_slice %10 {offsets = [0, 0], sizes = [8, 64], strides = [1, 1]} : vector<8x256xf32> to vector<8x64xf32>
    %cst_16 = arith.constant dense<0.000000e+00> : vector<8x8xf32>
    %19 = tpu.matmul %16, %17, %cst_16 {dimension_numbers = #tpu.dot_dimension_numbers<[1], [1], [0], [0], [0, 0, 1, 0], [], []>} : vector<8x64xf32>, vector<8x64xf32>, vector<8x8xf32> -> vector<8x8xf32>
    %cst_17 = arith.constant dense<0xFF800000> : vector<8xf32>
    %20 = vector.multi_reduction <maximumf>, %19, %cst_17 [1] : vector<8x8xf32> to vector<8xf32>
    %21 = vector.shape_cast %20 : vector<8xf32> to vector<8x1xf32>
    %22 = vector.broadcast %21 : vector<8x1xf32> to vector<8x8xf32>
    %23 = arith.subf %19, %22 : vector<8x8xf32>
    %24 = math.exp %23 : vector<8x8xf32>
    %cst_18 = arith.constant dense<0.000000e+00> : vector<8xf32>
    %25 = vector.multi_reduction <add>, %24, %cst_18 [1] : vector<8x8xf32> to vector<8xf32>
    %26 = vector.shape_cast %25 : vector<8xf32> to vector<8x1xf32>
    %cst_19 = arith.constant dense<0.000000e+00> : vector<8x64xf32>
    %27 = tpu.matmul %24, %18, %cst_19 {dimension_numbers = #tpu.dot_dimension_numbers<[1], [0], [0], [1], [0, 0, 1, 1], [], []>} : vector<8x8xf32>, vector<8x64xf32>, vector<8x64xf32> -> vector<8x64xf32>
    %28 = tpu.reciprocal %26 {approx = true} : vector<8x1xf32> -> vector<8x1xf32>
    %29 = vector.broadcast %28 : vector<8x1xf32> to vector<8x64xf32>
    %30 = arith.mulf %27, %29 : vector<8x64xf32>
    %31 = vector.extract_strided_slice %15 {offsets = [0, 64], sizes = [8, 64], strides = [1, 1]} : vector<8x256xf32> to vector<8x64xf32>
    %32 = vector.extract_strided_slice %7 {offsets = [0, 64], sizes = [8, 64], strides = [1, 1]} : vector<8x256xf32> to vector<8x64xf32>
    %33 = vector.extract_strided_slice %10 {offsets = [0, 64], sizes = [8, 64], strides = [1, 1]} : vector<8x256xf32> to vector<8x64xf32>
    %cst_20 = arith.constant dense<0.000000e+00> : vector<8x8xf32>
    %34 = tpu.matmul %31, %32, %cst_20 {dimension_numbers = #tpu.dot_dimension_numbers<[1], [1], [0], [0], [0, 0, 1, 0], [], []>} : vector<8x64xf32>, vector<8x64xf32>, vector<8x8xf32> -> vector<8x8xf32>
    %cst_21 = arith.constant dense<0xFF800000> : vector<8xf32>
    %35 = vector.multi_reduction <maximumf>, %34, %cst_21 [1] : vector<8x8xf32> to vector<8xf32>
    %36 = vector.shape_cast %35 : vector<8xf32> to vector<8x1xf32>
    %37 = vector.broadcast %36 : vector<8x1xf32> to vector<8x8xf32>
    %38 = arith.subf %34, %37 : vector<8x8xf32>
    %39 = math.exp %38 : vector<8x8xf32>
    %cst_22 = arith.constant dense<0.000000e+00> : vector<8xf32>
    %40 = vector.multi_reduction <add>, %39, %cst_22 [1] : vector<8x8xf32> to vector<8xf32>
    %41 = vector.shape_cast %40 : vector<8xf32> to vector<8x1xf32>
    %cst_23 = arith.constant dense<0.000000e+00> : vector<8x64xf32>
    %42 = tpu.matmul %39, %33, %cst_23 {dimension_numbers = #tpu.dot_dimension_numbers<[1], [0], [0], [1], [0, 0, 1, 1], [], []>} : vector<8x8xf32>, vector<8x64xf32>, vector<8x64xf32> -> vector<8x64xf32>
    %43 = tpu.reciprocal %41 {approx = true} : vector<8x1xf32> -> vector<8x1xf32>
    %44 = vector.broadcast %43 : vector<8x1xf32> to vector<8x64xf32>
    %45 = arith.mulf %42, %44 : vector<8x64xf32>
    %46 = vector.extract_strided_slice %15 {offsets = [0, 128], sizes = [8, 64], strides = [1, 1]} : vector<8x256xf32> to vector<8x64xf32>
    %47 = vector.extract_strided_slice %7 {offsets = [0, 128], sizes = [8, 64], strides = [1, 1]} : vector<8x256xf32> to vector<8x64xf32>
    %48 = vector.extract_strided_slice %10 {offsets = [0, 128], sizes = [8, 64], strides = [1, 1]} : vector<8x256xf32> to vector<8x64xf32>
    %cst_24 = arith.constant dense<0.000000e+00> : vector<8x8xf32>
    %49 = tpu.matmul %46, %47, %cst_24 {dimension_numbers = #tpu.dot_dimension_numbers<[1], [1], [0], [0], [0, 0, 1, 0], [], []>} : vector<8x64xf32>, vector<8x64xf32>, vector<8x8xf32> -> vector<8x8xf32>
    %cst_25 = arith.constant dense<0xFF800000> : vector<8xf32>
    %50 = vector.multi_reduction <maximumf>, %49, %cst_25 [1] : vector<8x8xf32> to vector<8xf32>
    %51 = vector.shape_cast %50 : vector<8xf32> to vector<8x1xf32>
    %52 = vector.broadcast %51 : vector<8x1xf32> to vector<8x8xf32>
    %53 = arith.subf %49, %52 : vector<8x8xf32>
    %54 = math.exp %53 : vector<8x8xf32>
    %cst_26 = arith.constant dense<0.000000e+00> : vector<8xf32>
    %55 = vector.multi_reduction <add>, %54, %cst_26 [1] : vector<8x8xf32> to vector<8xf32>
    %56 = vector.shape_cast %55 : vector<8xf32> to vector<8x1xf32>
    %cst_27 = arith.constant dense<0.000000e+00> : vector<8x64xf32>
    %57 = tpu.matmul %54, %48, %cst_27 {dimension_numbers = #tpu.dot_dimension_numbers<[1], [0], [0], [1], [0, 0, 1, 1], [], []>} : vector<8x8xf32>, vector<8x64xf32>, vector<8x64xf32> -> vector<8x64xf32>
    %58 = tpu.reciprocal %56 {approx = true} : vector<8x1xf32> -> vector<8x1xf32>
    %59 = vector.broadcast %58 : vector<8x1xf32> to vector<8x64xf32>
    %60 = arith.mulf %57, %59 : vector<8x64xf32>
    %61 = vector.extract_strided_slice %15 {offsets = [0, 192], sizes = [8, 64], strides = [1, 1]} : vector<8x256xf32> to vector<8x64xf32>
    %62 = vector.extract_strided_slice %7 {offsets = [0, 192], sizes = [8, 64], strides = [1, 1]} : vector<8x256xf32> to vector<8x64xf32>
    %63 = vector.extract_strided_slice %10 {offsets = [0, 192], sizes = [8, 64], strides = [1, 1]} : vector<8x256xf32> to vector<8x64xf32>
    %cst_28 = arith.constant dense<0.000000e+00> : vector<8x8xf32>
    %64 = tpu.matmul %61, %62, %cst_28 {dimension_numbers = #tpu.dot_dimension_numbers<[1], [1], [0], [0], [0, 0, 1, 0], [], []>} : vector<8x64xf32>, vector<8x64xf32>, vector<8x8xf32> -> vector<8x8xf32>
    %cst_29 = arith.constant dense<0xFF800000> : vector<8xf32>
    %65 = vector.multi_reduction <maximumf>, %64, %cst_29 [1] : vector<8x8xf32> to vector<8xf32>
    %66 = vector.shape_cast %65 : vector<8xf32> to vector<8x1xf32>
    %67 = vector.broadcast %66 : vector<8x1xf32> to vector<8x8xf32>
    %68 = arith.subf %64, %67 : vector<8x8xf32>
    %69 = math.exp %68 : vector<8x8xf32>
    %cst_30 = arith.constant dense<0.000000e+00> : vector<8xf32>
    %70 = vector.multi_reduction <add>, %69, %cst_30 [1] : vector<8x8xf32> to vector<8xf32>
    %71 = vector.shape_cast %70 : vector<8xf32> to vector<8x1xf32>
    %cst_31 = arith.constant dense<0.000000e+00> : vector<8x64xf32>
    %72 = tpu.matmul %69, %63, %cst_31 {dimension_numbers = #tpu.dot_dimension_numbers<[1], [0], [0], [1], [0, 0, 1, 1], [], []>} : vector<8x8xf32>, vector<8x64xf32>, vector<8x64xf32> -> vector<8x64xf32>
    %73 = tpu.reciprocal %71 {approx = true} : vector<8x1xf32> -> vector<8x1xf32>
    %74 = vector.broadcast %73 : vector<8x1xf32> to vector<8x64xf32>
    %75 = arith.mulf %72, %74 : vector<8x64xf32>
    %76 = tpu.concatenate %30, %45, %60, %75 in 1 : vector<8x64xf32>, vector<8x64xf32>, vector<8x64xf32>, vector<8x64xf32> -> vector<8x256xf32>
    %c0_32 = arith.constant 0 : index
    %c0_33 = arith.constant 0 : index
    %77 = vector.load %arg7[%c0_32, %c0_33] : memref<8x128xf32, #tpu.memory_space<vmem>>, vector<8x128xf32>
    %c0_34 = arith.constant 0 : index
    %c0_35 = arith.constant 0 : index
    %c0_36 = arith.constant 0 : index
    %78 = vector.load %arg5[%c0_34, %c0_35, %c0_36] : memref<1x256x128xf32, #tpu.memory_space<vmem>>, vector<1x256x128xf32>
    %79 = vector.shape_cast %78 : vector<1x256x128xf32> to vector<256x128xf32>
    %cst_37 = arith.constant dense<0.000000e+00> : vector<8x128xf32>
    %80 = tpu.matmul %76, %79, %cst_37 {dimension_numbers = #tpu.dot_dimension_numbers<[1], [0], [0], [1], [0, 0, 1, 1], [], []>} : vector<8x256xf32>, vector<256x128xf32>, vector<8x128xf32> -> vector<8x128xf32>
    %81 = arith.addf %77, %80 : vector<8x128xf32>
    %c0_38 = arith.constant 0 : index
    %c0_39 = arith.constant 0 : index
    %82 = vector.load %arg7[%c0_38, %c0_39] : memref<8x128xf32, #tpu.memory_space<vmem>>, vector<8x128xf32>
    tpu.vector_store %arg7[%c0_38, %c0_39], %81 {strides = array<i32>} : memref<8x128xf32, #tpu.memory_space<vmem>>, vector<8x128xf32>,
    %c1_i32 = arith.constant 1 : i32
    %83 = arith.cmpi eq, %arg2, %c1_i32 : i32
    %84 = arith.extui %83 : i1 to i32
    %c0_i32_40 = arith.constant 0 : i32
    %85 = arith.cmpi ne, %84, %c0_i32_40 : i32
    scf.if %85 {
      %c0_41 = arith.constant 0 : index
      %c0_42 = arith.constant 0 : index
      %86 = vector.load %arg7[%c0_41, %c0_42] : memref<8x128xf32, #tpu.memory_space<vmem>>, vector<8x128xf32>
      %c0_43 = arith.constant 0 : index
      %c0_44 = arith.constant 0 : index
      %c0_45 = arith.constant 0 : index
      %87 = vector.load %arg6[%c0_43, %c0_44, %c0_45] : memref<1x8x128xf32, #tpu.memory_space<vmem>>, vector<1x8x128xf32>
      %88 = vector.shape_cast %87 : vector<1x8x128xf32> to vector<8x128xf32>
      %89 = vector.shape_cast %86 : vector<8x128xf32> to vector<1x8x128xf32>
      tpu.vector_store %arg6[%c0_43, %c0_44, %c0_45], %89 {strides = array<i32>} : memref<1x8x128xf32, #tpu.memory_space<vmem>>, vector<1x8x128xf32>,
    } else {
    }
    return
  }
  func.func @transform_0(%arg0: i32, %arg1: i32, %arg2: i32) -> (i32, i32, i32) {
    %c0_i32 = arith.constant 0 : i32
    %c0_i32_0 = arith.constant 0 : i32
    %c0_i32_1 = arith.constant 0 : i32
    return %arg0, %c0_i32, %c0_i32_0 : i32, i32, i32
  }
  func.func @transform_1(%arg0: i32, %arg1: i32, %arg2: i32) -> (i32, i32, i32, i32) {
    %c0_i32 = arith.constant 0 : i32
    %c0_i32_0 = arith.constant 0 : i32
    %c0_i32_1 = arith.constant 0 : i32
    %c0_i32_2 = arith.constant 0 : i32
    return %c0_i32, %arg2, %c0_i32_0, %c0_i32_1 : i32, i32, i32, i32
  }
  func.func @transform_2(%arg0: i32, %arg1: i32, %arg2: i32) -> (i32, i32, i32) {
    %c0_i32 = arith.constant 0 : i32
    %c0_i32_0 = arith.constant 0 : i32
    %c0_i32_1 = arith.constant 0 : i32
    return %arg2, %c0_i32, %c0_i32_0 : i32, i32, i32
  }
  func.func @transform_3(%arg0: i32, %arg1: i32, %arg2: i32) -> (i32, i32, i32) {
    %c0_i32 = arith.constant 0 : i32
    %c0_i32_0 = arith.constant 0 : i32
    return %arg0, %arg1, %c0_i32 : i32, i32, i32
  }
}

</mosaic_0001>

<llo_original>
// kernel: tpu_custom_call.1
$region0: #{tpu_custom_call.1}
  #allocation0 [shape = 'u32[]', space=smem, size = 0x4, offset = 0x4, fixed_abs, tag = 'smem constant byte address 0x4 - core index']
  #allocation1 [shape = 'u32[72,128]{1,0:T(1,128)}', space=vmem, size = 0x9000, scoped, tag = 'internal scratch']
  #allocation2 [shape = 'f32[8,128]{1,0:T(8,128)}', space=vmem, size = 0x1000, scoped, tag = 'scratch operand']
  #allocation10 [shape = 's32[]', space=sflag, size = 0x4, offset = 0, fixed_abs, tag = 'sflag constant byte address 0x0 - dummy sync flag']
  %s0 = inlined_call_operand.hbm [shape: f32[2,8,128], index: 0, kind: input, shape index: {}]
  %s1 = inlined_call_operand.hbm [shape: f32[3,2,128,256], index: 1, kind: input, shape index: {}]
  %s2 = inlined_call_operand.hbm [shape: f32[2,256,128], index: 2, kind: input, shape index: {}]
  %s3 = inlined_call_operand.hbm [shape: f32[2,8,128], index: 3, kind: output, shape index: {}]
  %s4 = sld [smem:[#allocation0]]
  $region65: #{tpu_custom_call.1} parent=0
    _
  %s6 = ssub.s32 1, %s4
  %s7 = scalar_select 0, %s6, %s4
  $region1: #{tpu_custom_call.1} parent=0
    #allocation3 [shape = 'u8[8192]{0}', space=vmem, size = 0x2000, scoped, tag = 'input window, operand 0']
    #allocation4 [shape = 's32[2]{0}', space=sflag, size = 0x8, scoped, tag = 'scoped memory for tpu_custom_call.1']
    #allocation5 [shape = 's32[2]{0}', space=sflag, size = 0x8, scoped, tag = 'scoped memory for tpu_custom_call.1']
    #allocation6 [shape = 'u8[786432]{0}', space=vmem, size = 0xc0000, scoped, tag = 'input window, operand 1']
    #allocation7 [shape = 's32[2]{0}', space=sflag, size = 0x8, scoped, tag = 'scoped memory for tpu_custom_call.1']
    #allocation8 [shape = 'u8[262144]{0}', space=vmem, size = 0x40000, scoped, tag = 'input window, operand 2']
    #allocation9 [shape = 'u8[8192]{0}', space=vmem, size = 0x2000, scoped, tag = 'output window, operand 0']
    %8 = vsyncpa [#allocation4], 0
    %s9 = scalar_lea.sflag [#allocation4], 1
    %10 = vsyncpa %s9, 0
    %11 = vsyncpa [#allocation7], 0
    %s12 = scalar_lea.sflag [#allocation7], 1
    %13 = vsyncpa %s12, 0
    %14 = vsyncpa [#allocation5], 0
    %s15 = scalar_lea.sflag [#allocation5], 1
    %16 = vsyncpa %s15, 0
    loop: start=0, step=1, limit=6
    $region2: #{tpu_custom_call.1} parent=1 // loop_pre_header
      _
    $region3: #{tpu_custom_call.1} parent=1 // loop_header
      %s18 = sphi 0, %s22
      %p19 = scmp.ge.s32.totalorder %s18, 6
      %s25 = sphi 0, %s44
      %s26 = sphi 0, %s40
      %s27 = sphi 0, %s36
      %s28 = sphi 0, %s25
      %s29 = sphi 0, %s26
      %s30 = sphi 0, %s27
      %s31 = sphi 0, %s28
      %s32 = sphi 0, %s29
      %s33 = sphi 0, %s30
      %s47 = sphi 0, %s49
      %s50 = sphi 0, %s47
      %s51 = sphi 0, %s50
      %s67 = sphi 0, %s51
      %s73 = sphi 0, %s75
      %s76 = sphi 0, %s73
      %s77 = sphi 0, %s76
      %s93 = sphi 0, %s77
      %s99 = sphi 0, %s101
      %s102 = sphi 0, %s99
      %s103 = sphi 0, %s102
      %s119 = sphi 0, %s103
      %s127 = sphi 0, %s129
      %s130 = sphi 0, %s127
      %s131 = sphi 0, %s130
      %s147 = sphi 0, %s131
    $region4: #{tpu_custom_call.1} parent=1 // loop_header_branch
      %21 = sbr.rel (%p19) target = $region8
    $region5: #{tpu_custom_call.1} parent=1 // loop_body
      %s23 = ssub.s32 %s18, 1
      %s24 = ssub.s32 %s18, 2
      %s34 = sadd.s32 1, %s27
      %p35 = scmp.ge.s32.totalorder %s34, 2
      %s36 = scalar_select %p35, 0, %s34
      %s37 = sadd.s32 1, %s26
      %s38 = scalar_select %p35, %s37, %s26
      %p39 = scmp.ge.s32.totalorder %s38, 1
      %s40 = scalar_select %p39, 0, %s38
      %s41 = sadd.s32 1, %s25
      %s42 = scalar_select %p39, %s41, %s25
      %p43 = scmp.ge.s32.totalorder %s42, 2
      %s44 = scalar_select %p43, 0, %s42
      %s45 = ssub.s32 %s25, %s44
      %p46 = scmp.eq.s32.totalorder %s45, 0
      %s48 = sadd.s32 %s47, 1
      %s49 = scalar_select %p46, %s47, %s48
      %p52 = pneg %p46
      %p53 = scmp.eq.s32.totalorder %s18, 3
      %p54 = por %p52, %p53
      %p55 = scmp.ne.s32.totalorder %s47, %s50
      %p56 = scmp.eq.s32.totalorder %s18, 0
      %p57 = por %p55, %p56
      %p58 = scmp.ne.s32.totalorder %s47, %s50
      %p59 = scmp.eq.s32.totalorder %s23, 3
      %p60 = por %p58, %p59
      %p61 = scmp.ne.s32.totalorder %s50, %s51
      %p62 = scmp.eq.s32.totalorder %s23, 0
      %p63 = por %p61, %p62
      %p64 = scmp.ne.s32.totalorder %s50, %s51
      %p65 = scmp.eq.s32.totalorder %s24, 3
      %p66 = por %p64, %p65
      %p68 = scmp.ne.s32.totalorder %s51, %s67
      %p69 = scmp.eq.s32.totalorder %s24, 0
      %p70 = por %p68, %p69
      %s71 = ssub.s32 %s27, %s36
      %p72 = scmp.eq.s32.totalorder %s71, 0
      %s74 = sadd.s32 %s73, 1
      %s75 = scalar_select %p72, %s73, %s74
      %p78 = pneg %p72
      %p79 = scmp.eq.s32.totalorder %s18, 3
      %p80 = por %p78, %p79
      %p81 = scmp.ne.s32.totalorder %s73, %s76
      %p82 = scmp.eq.s32.totalorder %s18, 0
      %p83 = por %p81, %p82
      %p84 = scmp.ne.s32.totalorder %s73, %s76
      %p85 = scmp.eq.s32.totalorder %s23, 3
      %p86 = por %p84, %p85
      %p87 = scmp.ne.s32.totalorder %s76, %s77
      %p88 = scmp.eq.s32.totalorder %s23, 0
      %p89 = por %p87, %p88
      %p90 = scmp.ne.s32.totalorder %s76, %s77
      %p91 = scmp.eq.s32.totalorder %s24, 3
      %p92 = por %p90, %p91
      %p94 = scmp.ne.s32.totalorder %s77, %s93
      %p95 = scmp.eq.s32.totalorder %s24, 0
      %p96 = por %p94, %p95
      %s97 = ssub.s32 %s27, %s36
      %p98 = scmp.eq.s32.totalorder %s97, 0
      %s100 = sadd.s32 %s99, 1
      %s101 = scalar_select %p98, %s99, %s100
      %p104 = pneg %p98
      %p105 = scmp.eq.s32.totalorder %s18, 3
      %p106 = por %p104, %p105
      %p107 = scmp.ne.s32.totalorder %s99, %s102
      %p108 = scmp.eq.s32.totalorder %s18, 0
      %p109 = por %p107, %p108
      %p110 = scmp.ne.s32.totalorder %s99, %s102
      %p111 = scmp.eq.s32.totalorder %s23, 3
      %p112 = por %p110, %p111
      %p113 = scmp.ne.s32.totalorder %s102, %s103
      %p114 = scmp.eq.s32.totalorder %s23, 0
      %p115 = por %p113, %p114
      %p116 = scmp.ne.s32.totalorder %s102, %s103
      %p117 = scmp.eq.s32.totalorder %s24, 3
      %p118 = por %p116, %p117
      %p120 = scmp.ne.s32.totalorder %s103, %s119
      %p121 = scmp.eq.s32.totalorder %s24, 0
      %p122 = por %p120, %p121
      %s123 = ssub.s32 %s25, %s44
      %s124 = ssub.s32 %s26, %s40
      %s125 = sor.u32 %s123, %s124
      %p126 = scmp.eq.s32.totalorder %s125, 0
      %s128 = sadd.s32 %s127, 1
      %s129 = scalar_select %p126, %s127, %s128
      %p132 = pneg %p126
      %p133 = scmp.eq.s32.totalorder %s18, 3
      %p134 = por %p132, %p133
      %p135 = scmp.ne.s32.totalorder %s127, %s130
      %p136 = scmp.eq.s32.totalorder %s18, 0
      %p137 = por %p135, %p136
      %p138 = scmp.ne.s32.totalorder %s127, %s130
      %p139 = scmp.eq.s32.totalorder %s23, 3
      %p140 = por %p138, %p139
      %p141 = scmp.ne.s32.totalorder %s130, %s131
      %p142 = scmp.eq.s32.totalorder %s23, 0
      %p143 = por %p141, %p142
      %p144 = scmp.ne.s32.totalorder %s130, %s131
      %p145 = scmp.eq.s32.totalorder %s24, 3
      %p146 = por %p144, %p145
      %p148 = scmp.ne.s32.totalorder %s131, %s147
      %p149 = scmp.eq.s32.totalorder %s24, 0
      %p150 = por %p148, %p149
      %p151 = scmp.le.s32.totalorder 1, %s18
      %p152 = scmp.lt.s32.totalorder %s18, 5
      %p153 = pnand %p151, %p152
      %p154 = pneg %p153
      // Predicated region
      $region9: #{tpu_custom_call.1} parent=5 // pred_check
        _
      $region10: #{tpu_custom_call.1} parent=5 // pred_check_branch
        %156 = sbr.rel (%p153) target = $region12
      $region11: #{tpu_custom_call.1} parent=5 // pred_region
        %s157 = ssub.s32 %s18, 1
      $region12: #{tpu_custom_call.1} parent=5 // pred_fallthru
        _
      %p158 = scmp.lt.s32.totalorder %s18, 4
      // Predicated region
      $region13: #{tpu_custom_call.1} parent=5 // pred_check
        %p159 = pneg %p158
      $region14: #{tpu_custom_call.1} parent=5 // pred_check_branch
        %161 = sbr.rel (%p159) target = $region16
      $region15: #{tpu_custom_call.1} parent=5 // pred_region
        // Predicated region
        $region17: #{tpu_custom_call.1} parent=15 // pred_check
          %p162 = pneg %p57
        $region18: #{tpu_custom_call.1} parent=15 // pred_check_branch
          %164 = sbr.rel (%p162) target = $region20
        $region19: #{tpu_custom_call.1} parent=15 // pred_region
          %s165 = sand.u32 %s47, 1
          %s166 = scalar_lea.sflag [#allocation4], %s165
          %s167 = sand.u32 %s47, 1
          %s168 = smul.addr %s167, 8
          %s169 = scalar_lea.vmem [#allocation3], %s168
          %171 = vsyncadd %s166, 0
          %s172 = smul.addr %s25, 8
          %s173 = scalar_lea.hbm %s0, %s172
          %s175 = sshll.u32 %s173, 4
          %s176 = int_to_ptr.hbm [resolvable:$true] %s175
          %s177 = sshll.u32 %s169, 4
          %s178 = int_to_ptr.vmem [resolvable:$true] %s177
          %180 = dma.hbm_to_vmem [thread:$0]  %s176, 128, %s178, %s166
        $region20: #{tpu_custom_call.1} parent=15 // pred_fallthru
          _
        // Predicated region
        $region21: #{tpu_custom_call.1} parent=15 // pred_check
          %p181 = pneg %p83
        $region22: #{tpu_custom_call.1} parent=15 // pred_check_branch
          %183 = sbr.rel (%p181) target = $region24
        $region23: #{tpu_custom_call.1} parent=15 // pred_region
          #allocation11 [shape = 'u32[6]{0}', space=smem, size = 0x18, scoped, tag = 'DMA stride descriptor']
          %s184 = sand.u32 %s18, 1
          %s185 = scalar_lea.sflag [#allocation7], %s184
          %s186 = sand.u32 %s73, 1
          %s187 = smul.addr %s186, 768
          %s188 = scalar_lea.vmem [#allocation6], %s187
          %190 = vsyncadd %s185, 0
          %s191 = smul.addr %s27, 32
          %s192 = smul.addr %s191, 8
          %s193 = scalar_lea.hbm %s1, %s192
          %s195 = sshll.u32 1, 14
          %s196 = sxor.u32 4294967295, %s195
          %s198 = sld [smem:[#allocation0]]
          %s199 = sadd.s32 2, %s198
          %s201 = sshll.u32 7, 26
          %s202 = sxor.u32 4294967295, %s201
          %s203 = sand.u32 0, %s202
          %s204 = sshll.u32 %s199, 26
          %s205 = sor.u32 %s203, %s204
          %s206 = sshll.u32 %s193, 4
          %s207 = int_to_ptr.hbm [resolvable:$true] %s206
          %s208 = sshll.u32 %s188, 4
          %s209 = int_to_ptr.vmem [resolvable:$true] %s208
          %215 = sst [smem:[#allocation11]] 8192
          %s216 = scalar_lea.smem [#allocation11], 1
          %217 = sst [smem:[%s216]] 4096
          %s218 = scalar_lea.smem [#allocation11], 2
          %219 = sst [smem:[%s218]] 16
          %s220 = scalar_lea.smem [#allocation11], 3
          %221 = sst [smem:[%s220]] 256
          %s222 = scalar_lea.smem [#allocation11], 4
          %223 = sst [smem:[%s222]] 256
          %s224 = scalar_lea.smem [#allocation11], 5
          %225 = sst [smem:[%s224]] 16
          %227 = dma.general %s207, 12288, %s209, %s185, [#allocation10], [#allocation11], %s205, 0
        $region24: #{tpu_custom_call.1} parent=15 // pred_fallthru
          _
        // Predicated region
        $region25: #{tpu_custom_call.1} parent=15 // pred_check
          %p228 = pneg %p109
        $region26: #{tpu_custom_call.1} parent=15 // pred_check_branch
          %230 = sbr.rel (%p228) target = $region28
        $region27: #{tpu_custom_call.1} parent=15 // pred_region
          %s231 = sand.u32 %s18, 1
          %s232 = scalar_lea.sflag [#allocation7], %s231
          %s233 = sand.u32 %s99, 1
          %s234 = smul.addr %s233, 256
          %s235 = scalar_lea.vmem [#allocation8], %s234
          %237 = vsyncadd %s232, 0
          %s238 = smul.addr %s27, 32
          %s239 = smul.addr %s238, 8
          %s240 = scalar_lea.hbm %s2, %s239
          %s241 = sshll.u32 %s240, 4
          %s242 = int_to_ptr.hbm [resolvable:$true] %s241
          %s243 = sshll.u32 %s235, 4
          %s244 = int_to_ptr.vmem [resolvable:$true] %s243
          %249 = dma.hbm_to_vmem [thread:$0]  %s242, 4096, %s244, %s232, 128, 128, 8
        $region28: #{tpu_custom_call.1} parent=15 // pred_fallthru
          _
      $region16: #{tpu_custom_call.1} parent=5 // pred_fallthru
        _
      %p250 = scmp.le.s32.totalorder 1, %s18
      %p251 = scmp.lt.s32.totalorder %s18, 5
      %p252 = pnand %p250, %p251
      %p253 = pneg %p252
      // Predicated region
      $region29: #{tpu_custom_call.1} parent=5 // pred_check
        _
      $region30: #{tpu_custom_call.1} parent=5 // pred_check_branch
        %255 = sbr.rel (%p252) target = $region32
      $region31: #{tpu_custom_call.1} parent=5 // pred_region
        %s256 = ssub.s32 %s18, 1
        %s257 = sand.u32 %s50, 1
        %s258 = scalar_lea.sflag [#allocation4], %s257
        %s259 = sand.u32 %s50, 1
        %s260 = smul.addr %s259, 8
        %s261 = scalar_lea.vmem [#allocation3], %s260
        // Predicated region
        $region33: #{tpu_custom_call.1} parent=31 // pred_check
          %p262 = pneg %p63
        $region34: #{tpu_custom_call.1} parent=31 // pred_check_branch
          %264 = sbr.rel (%p262) target = $region36
        $region35: #{tpu_custom_call.1} parent=31 // pred_region
          %266 = dma.done %s258, 128
        $region36: #{tpu_custom_call.1} parent=31 // pred_fallthru
          _
        %s267 = sand.u32 %s23, 1
        %s268 = scalar_lea.sflag [#allocation7], %s267
        %s269 = sand.u32 %s76, 1
        %s270 = smul.addr %s269, 768
        %s271 = scalar_lea.vmem [#allocation6], %s270
        // Predicated region
        $region37: #{tpu_custom_call.1} parent=31 // pred_check
          %p272 = pneg %p89
        $region38: #{tpu_custom_call.1} parent=31 // pred_check_branch
          %274 = sbr.rel (%p272) target = $region40
        $region39: #{tpu_custom_call.1} parent=31 // pred_region
          %276 = dma.done %s268, 12288
        $region40: #{tpu_custom_call.1} parent=31 // pred_fallthru
          _
        %s277 = sand.u32 %s23, 1
        %s278 = scalar_lea.sflag [#allocation7], %s277
        %s279 = sand.u32 %s102, 1
        %s280 = smul.addr %s279, 256
        %s281 = scalar_lea.vmem [#allocation8], %s280
        // Predicated region
        $region41: #{tpu_custom_call.1} parent=31 // pred_check
          %p282 = pneg %p115
        $region42: #{tpu_custom_call.1} parent=31 // pred_check_branch
          %284 = sbr.rel (%p282) target = $region44
        $region43: #{tpu_custom_call.1} parent=31 // pred_region
          %286 = dma.done %s278, 4096
        $region44: #{tpu_custom_call.1} parent=31 // pred_fallthru
          _
        %s287 = sand.u32 %s50, 1
        %s288 = scalar_lea.sflag [#allocation4], %s287
        %s289 = sand.u32 %s50, 1
        %s290 = smul.addr %s289, 8
        %s291 = scalar_lea.vmem [#allocation3], %s290
        %p292 = pneg %p63
        %p293 = pneg %p60
        %s294 = sand.u32 %s23, 1
        %s295 = scalar_lea.sflag [#allocation7], %s294
        %s296 = sand.u32 %s76, 1
        %s297 = smul.addr %s296, 768
        %s298 = scalar_lea.vmem [#allocation6], %s297
        %p299 = pneg %p89
        %p300 = pneg %p86
        %s301 = sand.u32 %s23, 1
        %s302 = scalar_lea.sflag [#allocation7], %s301
        %s303 = sand.u32 %s102, 1
        %s304 = smul.addr %s303, 256
        %s305 = scalar_lea.vmem [#allocation8], %s304
        %p306 = pneg %p115
        %p307 = pneg %p112
        %p308 = pneg %p143
        %p309 = pneg %p140
        %s310 = sand.u32 %s130, 1
        %s311 = scalar_lea.sflag [#allocation5], %s310
        %s312 = sand.u32 %s130, 1
        %s313 = smul.addr %s312, 8
        %s314 = scalar_lea.vmem [#allocation9], %s313
        %p315 = scmp.eq.s32.totalorder %s30, 0
        // Predicated region
        $region45: #{tpu_custom_call.1} parent=31 // pred_check
          %p316 = pneg %p315
        $region46: #{tpu_custom_call.1} parent=31 // pred_check_branch
          %318 = sbr.rel (%p316) target = $region48
        $region47: #{tpu_custom_call.1} parent=31 // pred_region
          %319 = vst [vmem:[#allocation2] sm:$0xff] 0.0
        $region48: #{tpu_custom_call.1} parent=31 // pred_fallthru
          _
        %v320 = vld [vmem:[%s261] sm:$0xff]
        %s321 = scalar_lea.vmem %s271, 256 [#allocation6]
        %v322 = vld [vmem:[%s321] sm:$0xff]
        %v323 = vld [vmem:[%s321 + $0x8] sm:$0xff]
        %v324 = vld [vmem:[%s321 + $0x10] sm:$0xff]
        %v325 = vld [vmem:[%s321 + $0x18] sm:$0xff]
        %v326 = vld [vmem:[%s321 + $0x20] sm:$0xff]
        %v327 = vld [vmem:[%s321 + $0x28] sm:$0xff]
        %v328 = vld [vmem:[%s321 + $0x30] sm:$0xff]
        %v329 = vld [vmem:[%s321 + $0x38] sm:$0xff]
        %v330 = vld [vmem:[%s321 + $0x40] sm:$0xff]
        %v331 = vld [vmem:[%s321 + $0x48] sm:$0xff]
        %v332 = vld [vmem:[%s321 + $0x50] sm:$0xff]
        %v333 = vld [vmem:[%s321 + $0x58] sm:$0xff]
        %v334 = vld [vmem:[%s321 + $0x60] sm:$0xff]
        %v335 = vld [vmem:[%s321 + $0x68] sm:$0xff]
        %v336 = vld [vmem:[%s321 + $0x70] sm:$0xff]
        %v337 = vld [vmem:[%s321 + $0x78] sm:$0xff]
        %v338 = vld [vmem:[%s321 + $0x80] sm:$0xff]
        %v339 = vld [vmem:[%s321 + $0x88] sm:$0xff]
        %v340 = vld [vmem:[%s321 + $0x90] sm:$0xff]
        %v341 = vld [vmem:[%s321 + $0x98] sm:$0xff]
        %v342 = vld [vmem:[%s321 + $0xa0] sm:$0xff]
        %v343 = vld [vmem:[%s321 + $0xa8] sm:$0xff]
        %v344 = vld [vmem:[%s321 + $0xb0] sm:$0xff]
        %v345 = vld [vmem:[%s321 + $0xb8] sm:$0xff]
        %v346 = vld [vmem:[%s321 + $0xc0] sm:$0xff]
        %v347 = vld [vmem:[%s321 + $0xc8] sm:$0xff]
        %v348 = vld [vmem:[%s321 + $0xd0] sm:$0xff]
        %v349 = vld [vmem:[%s321 + $0xd8] sm:$0xff]
        %v350 = vld [vmem:[%s321 + $0xe0] sm:$0xff]
        %v351 = vld [vmem:[%s321 + $0xe8] sm:$0xff]
        %v352 = vld [vmem:[%s321 + $0xf0] sm:$0xff]
        %v353 = vld [vmem:[%s321 + $0xf8] sm:$0xff]
        %354 = vmatpush.msra.mxu0 %v352
        %355 = vmatpush.msra.mxu0 %v350
        %356 = vmatpush.msra.mxu0 %v348
        %357 = vmatpush.msra.mxu0 %v346
        %358 = vmatpush.msra.mxu0 %v344
        %359 = vmatpush.msra.mxu0 %v342
        %360 = vmatpush.msra.mxu0 %v340
        %361 = vmatpush.msra.mxu0 %v338
        %362 = vmatpush.msra.mxu0 %v336
        %363 = vmatpush.msra.mxu0 %v334
        %364 = vmatpush.msra.mxu0 %v332
        %365 = vmatpush.msra.mxu0 %v330
        %366 = vmatpush.msra.mxu0 %v328
        %367 = vmatpush.msra.mxu0 %v326
        %368 = vmatpush.msra.mxu0 %v324
        %369 = vmatpush.msra.mxu0 %v322
        %370 = vmatmul.f32.gmra.mxu0 %v320
        %v371 = vpop.f32.mrf.mxu0
        %v372 = vadd.f32 0.0, %v371
        %373 = vdwg.mxu0
        %374 = vmatpush.msra.mxu0 %v353
        %375 = vmatpush.msra.mxu0 %v351
        %376 = vmatpush.msra.mxu0 %v349
        %377 = vmatpush.msra.mxu0 %v347
        %378 = vmatpush.msra.mxu0 %v345
        %379 = vmatpush.msra.mxu0 %v343
        %380 = vmatpush.msra.mxu0 %v341
        %381 = vmatpush.msra.mxu0 %v339
        %382 = vmatpush.msra.mxu0 %v337
        %383 = vmatpush.msra.mxu0 %v335
        %384 = vmatpush.msra.mxu0 %v333
        %385 = vmatpush.msra.mxu0 %v331
        %386 = vmatpush.msra.mxu0 %v329
        %387 = vmatpush.msra.mxu0 %v327
        %388 = vmatpush.msra.mxu0 %v325
        %389 = vmatpush.msra.mxu0 %v323
        %390 = vmatmul.f32.gmra.mxu0 %v320
        %v391 = vpop.f32.mrf.mxu0
        %v392 = vadd.f32 0.0, %v391
        %393 = vdwg.mxu0
        %s394 = scalar_lea.vmem %s271, 512 [#allocation6]
        %v395 = vld [vmem:[%s394] sm:$0xff]
        %v396 = vld [vmem:[%s394 + $0x8] sm:$0xff]
        %v397 = vld [vmem:[%s394 + $0x10] sm:$0xff]
        %v398 = vld [vmem:[%s394 + $0x18] sm:$0xff]
        %v399 = vld [vmem:[%s394 + $0x20] sm:$0xff]
        %v400 = vld [vmem:[%s394 + $0x28] sm:$0xff]
        %v401 = vld [vmem:[%s394 + $0x30] sm:$0xff]
        %v402 = vld [vmem:[%s394 + $0x38] sm:$0xff]
        %v403 = vld [vmem:[%s394 + $0x40] sm:$0xff]
        %v404 = vld [vmem:[%s394 + $0x48] sm:$0xff]
        %v405 = vld [vmem:[%s394 + $0x50] sm:$0xff]
        %v406 = vld [vmem:[%s394 + $0x58] sm:$0xff]
        %v407 = vld [vmem:[%s394 + $0x60] sm:$0xff]
        %v408 = vld [vmem:[%s394 + $0x68] sm:$0xff]
        %v409 = vld [vmem:[%s394 + $0x70] sm:$0xff]
        %v410 = vld [vmem:[%s394 + $0x78] sm:$0xff]
        %v411 = vld [vmem:[%s394 + $0x80] sm:$0xff]
        %v412 = vld [vmem:[%s394 + $0x88] sm:$0xff]
        %v413 = vld [vmem:[%s394 + $0x90] sm:$0xff]
        %v414 = vld [vmem:[%s394 + $0x98] sm:$0xff]
        %v415 = vld [vmem:[%s394 + $0xa0] sm:$0xff]
        %v416 = vld [vmem:[%s394 + $0xa8] sm:$0xff]
        %v417 = vld [vmem:[%s394 + $0xb0] sm:$0xff]
        %v418 = vld [vmem:[%s394 + $0xb8] sm:$0xff]
        %v419 = vld [vmem:[%s394 + $0xc0] sm:$0xff]
        %v420 = vld [vmem:[%s394 + $0xc8] sm:$0xff]
        %v421 = vld [vmem:[%s394 + $0xd0] sm:$0xff]
        %v422 = vld [vmem:[%s394 + $0xd8] sm:$0xff]
        %v423 = vld [vmem:[%s394 + $0xe0] sm:$0xff]
        %v424 = vld [vmem:[%s394 + $0xe8] sm:$0xff]
        %v425 = vld [vmem:[%s394 + $0xf0] sm:$0xff]
        %v426 = vld [vmem:[%s394 + $0xf8] sm:$0xff]
        %427 = vmatpush.msra.mxu0 %v425
        %428 = vmatpush.msra.mxu0 %v423
        %429 = vmatpush.msra.mxu0 %v421
        %430 = vmatpush.msra.mxu0 %v419
        %431 = vmatpush.msra.mxu0 %v417
        %432 = vmatpush.msra.mxu0 %v415
        %433 = vmatpush.msra.mxu0 %v413
        %434 = vmatpush.msra.mxu0 %v411
        %435 = vmatpush.msra.mxu0 %v409
        %436 = vmatpush.msra.mxu0 %v407
        %437 = vmatpush.msra.mxu0 %v405
        %438 = vmatpush.msra.mxu0 %v403
        %439 = vmatpush.msra.mxu0 %v401
        %440 = vmatpush.msra.mxu0 %v399
        %441 = vmatpush.msra.mxu0 %v397
        %442 = vmatpush.msra.mxu0 %v395
        %443 = vmatmul.f32.gmra.mxu0 %v320
        %v444 = vpop.f32.mrf.mxu0
        %v445 = vadd.f32 0.0, %v444
        %446 = vdwg.mxu0
        %447 = vmatpush.msra.mxu0 %v426
        %448 = vmatpush.msra.mxu0 %v424
        %449 = vmatpush.msra.mxu0 %v422
        %450 = vmatpush.msra.mxu0 %v420
        %451 = vmatpush.msra.mxu0 %v418
        %452 = vmatpush.msra.mxu0 %v416
        %453 = vmatpush.msra.mxu0 %v414
        %454 = vmatpush.msra.mxu0 %v412
        %455 = vmatpush.msra.mxu0 %v410
        %456 = vmatpush.msra.mxu0 %v408
        %457 = vmatpush.msra.mxu0 %v406
        %458 = vmatpush.msra.mxu0 %v404
        %459 = vmatpush.msra.mxu0 %v402
        %460 = vmatpush.msra.mxu0 %v400
        %461 = vmatpush.msra.mxu0 %v398
        %462 = vmatpush.msra.mxu0 %v396
        %463 = vmatmul.f32.gmra.mxu0 %v320
        %v464 = vpop.f32.mrf.mxu0
        %v465 = vadd.f32 0.0, %v464
        %466 = vdwg.mxu0
        %v467 = vld [vmem:[%s271] sm:$0xff]
        %v468 = vld [vmem:[%s271 + $0x8] sm:$0xff]
        %v469 = vld [vmem:[%s271 + $0x10] sm:$0xff]
        %v470 = vld [vmem:[%s271 + $0x18] sm:$0xff]
        %v471 = vld [vmem:[%s271 + $0x20] sm:$0xff]
        %v472 = vld [vmem:[%s271 + $0x28] sm:$0xff]
        %v473 = vld [vmem:[%s271 + $0x30] sm:$0xff]
        %v474 = vld [vmem:[%s271 + $0x38] sm:$0xff]
        %v475 = vld [vmem:[%s271 + $0x40] sm:$0xff]
        %v476 = vld [vmem:[%s271 + $0x48] sm:$0xff]
        %v477 = vld [vmem:[%s271 + $0x50] sm:$0xff]
        %v478 = vld [vmem:[%s271 + $0x58] sm:$0xff]
        %v479 = vld [vmem:[%s271 + $0x60] sm:$0xff]
        %v480 = vld [vmem:[%s271 + $0x68] sm:$0xff]
        %v481 = vld [vmem:[%s271 + $0x70] sm:$0xff]
        %v482 = vld [vmem:[%s271 + $0x78] sm:$0xff]
        %v483 = vld [vmem:[%s271 + $0x80] sm:$0xff]
        %v484 = vld [vmem:[%s271 + $0x88] sm:$0xff]
        %v485 = vld [vmem:[%s271 + $0x90] sm:$0xff]
        %v486 = vld [vmem:[%s271 + $0x98] sm:$0xff]
        %v487 = vld [vmem:[%s271 + $0xa0] sm:$0xff]
        %v488 = vld [vmem:[%s271 + $0xa8] sm:$0xff]
        %v489 = vld [vmem:[%s271 + $0xb0] sm:$0xff]
        %v490 = vld [vmem:[%s271 + $0xb8] sm:$0xff]
        %v491 = vld [vmem:[%s271 + $0xc0] sm:$0xff]
        %v492 = vld [vmem:[%s271 + $0xc8] sm:$0xff]
        %v493 = vld [vmem:[%s271 + $0xd0] sm:$0xff]
        %v494 = vld [vmem:[%s271 + $0xd8] sm:$0xff]
        %v495 = vld [vmem:[%s271 + $0xe0] sm:$0xff]
        %v496 = vld [vmem:[%s271 + $0xe8] sm:$0xff]
        %v497 = vld [vmem:[%s271 + $0xf0] sm:$0xff]
        %v498 = vld [vmem:[%s271 + $0xf8] sm:$0xff]
        %499 = vmatpush.msra.mxu0 %v497
        %500 = vmatpush.msra.mxu0 %v495
        %501 = vmatpush.msra.mxu0 %v493
        %502 = vmatpush.msra.mxu0 %v491
        %503 = vmatpush.msra.mxu0 %v489
        %504 = vmatpush.msra.mxu0 %v487
        %505 = vmatpush.msra.mxu0 %v485
        %506 = vmatpush.msra.mxu0 %v483
        %507 = vmatpush.msra.mxu0 %v481
        %508 = vmatpush.msra.mxu0 %v479
        %509 = vmatpush.msra.mxu0 %v477
        %510 = vmatpush.msra.mxu0 %v475
        %511 = vmatpush.msra.mxu0 %v473
        %512 = vmatpush.msra.mxu0 %v471
        %513 = vmatpush.msra.mxu0 %v469
        %514 = vmatpush.msra.mxu0 %v467
        %515 = vmatmul.f32.gmra.mxu0 %v320
        %v516 = vpop.f32.mrf.mxu0
        %v517 = vadd.f32 0.0, %v516
        %518 = vdwg.mxu0
        %519 = vmatpush.msra.mxu0 %v498
        %520 = vmatpush.msra.mxu0 %v496
        %521 = vmatpush.msra.mxu0 %v494
        %522 = vmatpush.msra.mxu0 %v492
        %523 = vmatpush.msra.mxu0 %v490
        %524 = vmatpush.msra.mxu0 %v488
        %525 = vmatpush.msra.mxu0 %v486
        %526 = vmatpush.msra.mxu0 %v484
        %527 = vmatpush.msra.mxu0 %v482
        %528 = vmatpush.msra.mxu0 %v480
        %529 = vmatpush.msra.mxu0 %v478
        %530 = vmatpush.msra.mxu0 %v476
        %531 = vmatpush.msra.mxu0 %v474
        %532 = vmatpush.msra.mxu0 %v472
        %533 = vmatpush.msra.mxu0 %v470
        %534 = vmatpush.msra.mxu0 %v468
        %535 = vmatmul.f32.gmra.mxu0 %v320
        %v536 = vpop.f32.mrf.mxu0
        %v537 = vadd.f32 0.0, %v536
        %538 = vdwg.mxu0
        %v539 = vmul.f32 %v517, 0.125
        %v540 = vmul.f32 %v537, 0.125
        %vm541 = vcmask 523264
        %v543 = vsel %vm541, %v539, 0
        %v546 = vsel %vm541, %v372, 0
        %548 = vmatpush.xpose.msra.mxu0 0.0
        %549 = vmatpush.xpose.msra.mxu0 0.0
        %550 = vmatpush.xpose.msra.mxu0 0.0
        %551 = vmatpush.xpose.msra.mxu0 0.0
        %552 = vmatpush.xpose.msra.mxu0 0.0
        %553 = vmatpush.xpose.msra.mxu0 0.0
        %554 = vmatpush.xpose.msra.mxu0 0.0
        %555 = vmatpush.xpose.msra.mxu0 0.0
        %556 = vmatpush.xpose.msra.mxu0 0.0
        %557 = vmatpush.xpose.msra.mxu0 0.0
        %558 = vmatpush.xpose.msra.mxu0 0.0
        %559 = vmatpush.xpose.msra.mxu0 0.0
        %560 = vmatpush.xpose.msra.mxu0 0.0
        %561 = vmatpush.xpose.msra.mxu0 0.0
        %562 = vmatpush.xpose.msra.mxu0 0.0
        %563 = vmatpush.xpose.msra.mxu0 %v546
        %564 = vmatmul.f32.gmra.mxu0 %v543
        %v565 = vpop.f32.mrf.mxu0
        %v566 = vadd.f32 0.0, %v565
        %567 = vdwg.mxu0
        %vm568 = vcmask 64512
        %v569 = vsel %vm568, %v566, -inf
        %570 = vmax.xlane.f32.xlu0 %v569
        %v571 = vpop.xlane.xlu0 %570
        %v572 = vsub.f32 %v566, %v571
        %v573 = vmul.f32 %v572, 1.442695
        %v574 = vpow.pop %v573
        %v575 = vsel %vm568, %v574, 0.0
        %576 = vadd.xlane.f32.xlu0 %v575
        %v577 = vpop.xlane.xlu0 %576
        %v579 = vsel %vm568, %v574, 0
        %581 = vmatpush.msra.mxu0 0.0
        %582 = vmatpush.msra.mxu0 0.0
        %583 = vmatpush.msra.mxu0 0.0
        %584 = vmatpush.msra.mxu0 0.0
        %585 = vmatpush.msra.mxu0 0.0
        %586 = vmatpush.msra.mxu0 0.0
        %587 = vmatpush.msra.mxu0 0.0
        %588 = vmatpush.msra.mxu0 0.0
        %589 = vmatpush.msra.mxu0 0.0
        %590 = vmatpush.msra.mxu0 0.0
        %591 = vmatpush.msra.mxu0 0.0
        %592 = vmatpush.msra.mxu0 0.0
        %593 = vmatpush.msra.mxu0 0.0
        %594 = vmatpush.msra.mxu0 0.0
        %595 = vmatpush.msra.mxu0 0.0
        %596 = vmatpush.msra.mxu0 %v445
        %597 = vmatmul.f32.gmra.mxu0 %v579
        %v598 = vpop.f32.mrf.mxu0
        %v599 = vadd.f32 0.0, %v598
        %600 = vdwg.mxu0
        %v601 = vrcp.pop %v577
        %v602 = vmul.f32 %v599, %v601
        %603 = vrot.lane.b32.xlu0 %v539, 64
        %v604 = vpop.permute.xlu0 %603
        %605 = vrot.lane.b32.xlu0 %v372, 64
        %v606 = vpop.permute.xlu0 %605
        %v607 = vsel %vm541, %v604, 0
        %v609 = vsel %vm541, %v606, 0
        %611 = vmatpush.xpose.msra.mxu0 0.0
        %612 = vmatpush.xpose.msra.mxu0 0.0
        %613 = vmatpush.xpose.msra.mxu0 0.0
        %614 = vmatpush.xpose.msra.mxu0 0.0
        %615 = vmatpush.xpose.msra.mxu0 0.0
        %616 = vmatpush.xpose.msra.mxu0 0.0
        %617 = vmatpush.xpose.msra.mxu0 0.0
        %618 = vmatpush.xpose.msra.mxu0 0.0
        %619 = vmatpush.xpose.msra.mxu0 0.0
        %620 = vmatpush.xpose.msra.mxu0 0.0
        %621 = vmatpush.xpose.msra.mxu0 0.0
        %622 = vmatpush.xpose.msra.mxu0 0.0
        %623 = vmatpush.xpose.msra.mxu0 0.0
        %624 = vmatpush.xpose.msra.mxu0 0.0
        %625 = vmatpush.xpose.msra.mxu0 0.0
        %626 = vmatpush.xpose.msra.mxu0 %v609
        %627 = vmatmul.f32.gmra.mxu0 %v607
        %v628 = vpop.f32.mrf.mxu0
        %v629 = vadd.f32 0.0, %v628
        %630 = vdwg.mxu0
        %v631 = vsel %vm568, %v629, -inf
        %632 = vmax.xlane.f32.xlu0 %v631
        %v633 = vpop.xlane.xlu0 %632
        %v634 = vsub.f32 %v629, %v633
        %v635 = vmul.f32 %v634, 1.442695
        %v636 = vpow.pop %v635
        %v637 = vsel %vm568, %v636, 0.0
        %638 = vadd.xlane.f32.xlu0 %v637
        %v639 = vpop.xlane.xlu0 %638
        %641 = vrot.lane.b32.xlu0 %v445, 64
        %v642 = vpop.permute.xlu0 %641
        %v645 = vsel %vm568, %v636, 0
        %647 = vmatpush.msra.mxu0 0.0
        %648 = vmatpush.msra.mxu0 0.0
        %649 = vmatpush.msra.mxu0 0.0
        %650 = vmatpush.msra.mxu0 0.0
        %651 = vmatpush.msra.mxu0 0.0
        %652 = vmatpush.msra.mxu0 0.0
        %653 = vmatpush.msra.mxu0 0.0
        %654 = vmatpush.msra.mxu0 0.0
        %655 = vmatpush.msra.mxu0 0.0
        %656 = vmatpush.msra.mxu0 0.0
        %657 = vmatpush.msra.mxu0 0.0
        %658 = vmatpush.msra.mxu0 0.0
        %659 = vmatpush.msra.mxu0 0.0
        %660 = vmatpush.msra.mxu0 0.0
        %661 = vmatpush.msra.mxu0 0.0
        %662 = vmatpush.msra.mxu0 %v642
        %663 = vmatmul.f32.gmra.mxu0 %v645
        %v664 = vpop.f32.mrf.mxu0
        %v665 = vadd.f32 0.0, %v664
        %666 = vdwg.mxu0
        %v667 = vrcp.pop %v639
        %v668 = vmul.f32 %v665, %v667
        %v670 = vsel %vm541, %v540, 0
        %v673 = vsel %vm541, %v392, 0
        %675 = vmatpush.xpose.msra.mxu0 0.0
        %676 = vmatpush.xpose.msra.mxu0 0.0
        %677 = vmatpush.xpose.msra.mxu0 0.0
        %678 = vmatpush.xpose.msra.mxu0 0.0
        %679 = vmatpush.xpose.msra.mxu0 0.0
        %680 = vmatpush.xpose.msra.mxu0 0.0
        %681 = vmatpush.xpose.msra.mxu0 0.0
        %682 = vmatpush.xpose.msra.mxu0 0.0
        %683 = vmatpush.xpose.msra.mxu0 0.0
        %684 = vmatpush.xpose.msra.mxu0 0.0
        %685 = vmatpush.xpose.msra.mxu0 0.0
        %686 = vmatpush.xpose.msra.mxu0 0.0
        %687 = vmatpush.xpose.msra.mxu0 0.0
        %688 = vmatpush.xpose.msra.mxu0 0.0
        %689 = vmatpush.xpose.msra.mxu0 0.0
        %690 = vmatpush.xpose.msra.mxu0 %v673
        %691 = vmatmul.f32.gmra.mxu0 %v670
        %v692 = vpop.f32.mrf.mxu0
        %v693 = vadd.f32 0.0, %v692
        %694 = vdwg.mxu0
        %v695 = vsel %vm568, %v693, -inf
        %696 = vmax.xlane.f32.xlu0 %v695
        %v697 = vpop.xlane.xlu0 %696
        %v698 = vsub.f32 %v693, %v697
        %v699 = vmul.f32 %v698, 1.442695
        %v700 = vpow.pop %v699
        %v701 = vsel %vm568, %v700, 0.0
        %702 = vadd.xlane.f32.xlu0 %v701
        %v703 = vpop.xlane.xlu0 %702
        %v705 = vsel %vm568, %v700, 0
        %707 = vmatpush.msra.mxu0 0.0
        %708 = vmatpush.msra.mxu0 0.0
        %709 = vmatpush.msra.mxu0 0.0
        %710 = vmatpush.msra.mxu0 0.0
        %711 = vmatpush.msra.mxu0 0.0
        %712 = vmatpush.msra.mxu0 0.0
        %713 = vmatpush.msra.mxu0 0.0
        %714 = vmatpush.msra.mxu0 0.0
        %715 = vmatpush.msra.mxu0 0.0
        %716 = vmatpush.msra.mxu0 0.0
        %717 = vmatpush.msra.mxu0 0.0
        %718 = vmatpush.msra.mxu0 0.0
        %719 = vmatpush.msra.mxu0 0.0
        %720 = vmatpush.msra.mxu0 0.0
        %721 = vmatpush.msra.mxu0 0.0
        %722 = vmatpush.msra.mxu0 %v465
        %723 = vmatmul.f32.gmra.mxu0 %v705
        %v724 = vpop.f32.mrf.mxu0
        %v725 = vadd.f32 0.0, %v724
        %726 = vdwg.mxu0
        %v727 = vrcp.pop %v703
        %v728 = vmul.f32 %v725, %v727
        %729 = vrot.lane.b32.xlu0 %v540, 64
        %v730 = vpop.permute.xlu0 %729
        %731 = vrot.lane.b32.xlu0 %v392, 64
        %v732 = vpop.permute.xlu0 %731
        %v733 = vsel %vm541, %v730, 0
        %v735 = vsel %vm541, %v732, 0
        %737 = vmatpush.xpose.msra.mxu0 0.0
        %738 = vmatpush.xpose.msra.mxu0 0.0
        %739 = vmatpush.xpose.msra.mxu0 0.0
        %740 = vmatpush.xpose.msra.mxu0 0.0
        %741 = vmatpush.xpose.msra.mxu0 0.0
        %742 = vmatpush.xpose.msra.mxu0 0.0
        %743 = vmatpush.xpose.msra.mxu0 0.0
        %744 = vmatpush.xpose.msra.mxu0 0.0
        %745 = vmatpush.xpose.msra.mxu0 0.0
        %746 = vmatpush.xpose.msra.mxu0 0.0
        %747 = vmatpush.xpose.msra.mxu0 0.0
        %748 = vmatpush.xpose.msra.mxu0 0.0
        %749 = vmatpush.xpose.msra.mxu0 0.0
        %750 = vmatpush.xpose.msra.mxu0 0.0
        %751 = vmatpush.xpose.msra.mxu0 0.0
        %752 = vmatpush.xpose.msra.mxu0 %v735
        %753 = vmatmul.f32.gmra.mxu0 %v733
        %v754 = vpop.f32.mrf.mxu0
        %v755 = vadd.f32 0.0, %v754
        %756 = vdwg.mxu0
        %v757 = vsel %vm568, %v755, -inf
        %758 = vmax.xlane.f32.xlu0 %v757
        %v759 = vpop.xlane.xlu0 %758
        %v760 = vsub.f32 %v755, %v759
        %v761 = vmul.f32 %v760, 1.442695
        %v762 = vpow.pop %v761
        %v763 = vsel %vm568, %v762, 0.0
        %764 = vadd.xlane.f32.xlu0 %v763
        %v765 = vpop.xlane.xlu0 %764
        %767 = vrot.lane.b32.xlu0 %v465, 64
        %v768 = vpop.permute.xlu0 %767
        %v771 = vsel %vm568, %v762, 0
        %773 = vmatpush.msra.mxu0 0.0
        %774 = vmatpush.msra.mxu0 0.0
        %775 = vmatpush.msra.mxu0 0.0
        %776 = vmatpush.msra.mxu0 0.0
        %777 = vmatpush.msra.mxu0 0.0
        %778 = vmatpush.msra.mxu0 0.0
        %779 = vmatpush.msra.mxu0 0.0
        %780 = vmatpush.msra.mxu0 0.0
        %781 = vmatpush.msra.mxu0 0.0
        %782 = vmatpush.msra.mxu0 0.0
        %783 = vmatpush.msra.mxu0 0.0
        %784 = vmatpush.msra.mxu0 0.0
        %785 = vmatpush.msra.mxu0 0.0
        %786 = vmatpush.msra.mxu0 0.0
        %787 = vmatpush.msra.mxu0 0.0
        %788 = vmatpush.msra.mxu0 %v768
        %789 = vmatmul.f32.gmra.mxu0 %v771
        %v790 = vpop.f32.mrf.mxu0
        %v791 = vadd.f32 0.0, %v790
        %792 = vdwg.mxu0
        %v793 = vrcp.pop %v765
        %v794 = vmul.f32 %v791, %v793
        %796 = vrot.lane.b32.xlu0 %v668, 64
        %v797 = vpop.permute.xlu0 %796
        %800 = vrot.lane.b32.xlu0 %v794, 64
        %v801 = vpop.permute.xlu0 %800
        %v803 = vsel %vm541, %v602, %v797
        %v804 = vsel %vm541, %v728, %v801
        %v805 = vld [vmem:[#allocation2] sm:$0xff]
        %v806 = vld [vmem:[%s281] sm:$0xff]
        %v807 = vld [vmem:[%s281 + $0x8] sm:$0xff]
        %v808 = vld [vmem:[%s281 + $0x10] sm:$0xff]
        %v809 = vld [vmem:[%s281 + $0x18] sm:$0xff]
        %v810 = vld [vmem:[%s281 + $0x20] sm:$0xff]
        %v811 = vld [vmem:[%s281 + $0x28] sm:$0xff]
        %v812 = vld [vmem:[%s281 + $0x30] sm:$0xff]
        %v813 = vld [vmem:[%s281 + $0x38] sm:$0xff]
        %v814 = vld [vmem:[%s281 + $0x40] sm:$0xff]
        %v815 = vld [vmem:[%s281 + $0x48] sm:$0xff]
        %v816 = vld [vmem:[%s281 + $0x50] sm:$0xff]
        %v817 = vld [vmem:[%s281 + $0x58] sm:$0xff]
        %v818 = vld [vmem:[%s281 + $0x60] sm:$0xff]
        %v819 = vld [vmem:[%s281 + $0x68] sm:$0xff]
        %v820 = vld [vmem:[%s281 + $0x70] sm:$0xff]
        %v821 = vld [vmem:[%s281 + $0x78] sm:$0xff]
        %v822 = vld [vmem:[%s281 + $0x80] sm:$0xff]
        %v823 = vld [vmem:[%s281 + $0x88] sm:$0xff]
        %v824 = vld [vmem:[%s281 + $0x90] sm:$0xff]
        %v825 = vld [vmem:[%s281 + $0x98] sm:$0xff]
        %v826 = vld [vmem:[%s281 + $0xa0] sm:$0xff]
        %v827 = vld [vmem:[%s281 + $0xa8] sm:$0xff]
        %v828 = vld [vmem:[%s281 + $0xb0] sm:$0xff]
        %v829 = vld [vmem:[%s281 + $0xb8] sm:$0xff]
        %v830 = vld [vmem:[%s281 + $0xc0] sm:$0xff]
        %v831 = vld [vmem:[%s281 + $0xc8] sm:$0xff]
        %v832 = vld [vmem:[%s281 + $0xd0] sm:$0xff]
        %v833 = vld [vmem:[%s281 + $0xd8] sm:$0xff]
        %v834 = vld [vmem:[%s281 + $0xe0] sm:$0xff]
        %v835 = vld [vmem:[%s281 + $0xe8] sm:$0xff]
        %v836 = vld [vmem:[%s281 + $0xf0] sm:$0xff]
        %v837 = vld [vmem:[%s281 + $0xf8] sm:$0xff]
        %838 = vmatpush.msra.mxu0 %v821
        %839 = vmatpush.msra.mxu0 %v820
        %840 = vmatpush.msra.mxu0 %v819
        %841 = vmatpush.msra.mxu0 %v818
        %842 = vmatpush.msra.mxu0 %v817
        %843 = vmatpush.msra.mxu0 %v816
        %844 = vmatpush.msra.mxu0 %v815
        %845 = vmatpush.msra.mxu0 %v814
        %846 = vmatpush.msra.mxu0 %v813
        %847 = vmatpush.msra.mxu0 %v812
        %848 = vmatpush.msra.mxu0 %v811
        %849 = vmatpush.msra.mxu0 %v810
        %850 = vmatpush.msra.mxu0 %v809
        %851 = vmatpush.msra.mxu0 %v808
        %852 = vmatpush.msra.mxu0 %v807
        %853 = vmatpush.msra.mxu0 %v806
        %854 = vmatmul.f32.gmra.mxu0 %v803
        %v855 = vpop.f32.mrf.mxu0
        %v856 = vadd.f32 0.0, %v855
        %857 = vdwg.mxu0
        %858 = vmatpush.msra.mxu0 %v837
        %859 = vmatpush.msra.mxu0 %v836
        %860 = vmatpush.msra.mxu0 %v835
        %861 = vmatpush.msra.mxu0 %v834
        %862 = vmatpush.msra.mxu0 %v833
        %863 = vmatpush.msra.mxu0 %v832
        %864 = vmatpush.msra.mxu0 %v831
        %865 = vmatpush.msra.mxu0 %v830
        %866 = vmatpush.msra.mxu0 %v829
        %867 = vmatpush.msra.mxu0 %v828
        %868 = vmatpush.msra.mxu0 %v827
        %869 = vmatpush.msra.mxu0 %v826
        %870 = vmatpush.msra.mxu0 %v825
        %871 = vmatpush.msra.mxu0 %v824
        %872 = vmatpush.msra.mxu0 %v823
        %873 = vmatpush.msra.mxu0 %v822
        %874 = vmatmul.f32.gmra.mxu0 %v804
        %v875 = vpop.f32.mrf.mxu0
        %v876 = vadd.f32 %v856, %v875
        %877 = vdwg.mxu0
        %v878 = vadd.f32 %v805, %v876
        %879 = vst [vmem:[#allocation2] sm:$0xff] %v878
        %p880 = scmp.eq.s32.totalorder %s30, 1
        // Predicated region
        $region49: #{tpu_custom_call.1} parent=31 // pred_check
          %p881 = pneg %p880
        $region50: #{tpu_custom_call.1} parent=31 // pred_check_branch
          %883 = sbr.rel (%p881) target = $region52
        $region51: #{tpu_custom_call.1} parent=31 // pred_region
          %v884 = vld [vmem:[#allocation2] sm:$0xff]
          %885 = vst [vmem:[%s314] sm:$0xff] %v884
        $region52: #{tpu_custom_call.1} parent=31 // pred_fallthru
          _
        %s886 = sand.u32 %s130, 1
        %s887 = scalar_lea.sflag [#allocation5], %s886
        %s888 = sand.u32 %s130, 1
        %s889 = smul.addr %s888, 8
        %s890 = scalar_lea.vmem [#allocation9], %s889
        // Predicated region
        $region53: #{tpu_custom_call.1} parent=31 // pred_check
          %p891 = pneg %p140
        $region54: #{tpu_custom_call.1} parent=31 // pred_check_branch
          %893 = sbr.rel (%p891) target = $region56
        $region55: #{tpu_custom_call.1} parent=31 // pred_region
          %895 = vsyncadd %s887, 0
          %s896 = sadd.s32 %s29, %s28
          %s897 = smul.addr %s896, 8
          %s898 = scalar_lea.hbm %s3, %s897
          %s900 = sshll.u32 %s890, 4
          %s901 = int_to_ptr.vmem [resolvable:$true] %s900
          %s902 = sshll.u32 %s898, 4
          %s903 = int_to_ptr.hbm [resolvable:$true] %s902
          %905 = dma.vmem_to_hbm [thread:$0]  %s901, 128, %s903, %s887
        $region56: #{tpu_custom_call.1} parent=31 // pred_fallthru
          _
      $region32: #{tpu_custom_call.1} parent=5 // pred_fallthru
        _
      %p906 = scmp.le.s32.totalorder 2, %s18
      // Predicated region
      $region57: #{tpu_custom_call.1} parent=5 // pred_check
        %p907 = pneg %p906
      $region58: #{tpu_custom_call.1} parent=5 // pred_check_branch
        %909 = sbr.rel (%p907) target = $region60
      $region59: #{tpu_custom_call.1} parent=5 // pred_region
        %s910 = ssub.s32 %s18, 2
        // Predicated region
        $region61: #{tpu_custom_call.1} parent=59 // pred_check
          %p911 = pneg %p146
        $region62: #{tpu_custom_call.1} parent=59 // pred_check_branch
          %913 = sbr.rel (%p911) target = $region64
        $region63: #{tpu_custom_call.1} parent=59 // pred_region
          %s914 = sand.u32 %s131, 1
          %s915 = scalar_lea.sflag [#allocation5], %s914
          %s916 = sand.u32 %s131, 1
          %s917 = smul.addr %s916, 8
          %s918 = scalar_lea.vmem [#allocation9], %s917
          %920 = dma.done %s915, 128
        $region64: #{tpu_custom_call.1} parent=59 // pred_fallthru
          _
      $region60: #{tpu_custom_call.1} parent=5 // pred_fallthru
        _
    $region6: #{tpu_custom_call.1} parent=1 // loop_footer
      %s22 = sadd.s32 1, %s18
    $region7: #{tpu_custom_call.1} parent=1 // loop_footer_branch
      %17 = sbr.rel target = $region3
    $region8: #{tpu_custom_call.1} parent=1 // loop_exit
      _
    %921 = vsyncpa [#allocation4], 1
    %s922 = scalar_lea.sflag [#allocation4], 1
    %923 = vsyncpa %s922, 1
    %924 = vsyncpa [#allocation7], 1
    %s925 = scalar_lea.sflag [#allocation7], 1
    %926 = vsyncpa %s925, 1
    %927 = vsyncpa [#allocation5], 1
    %s928 = scalar_lea.sflag [#allocation5], 1
    %929 = vsyncpa %s928, 1

</llo_original>
